<compile_context>
chip_gen: v7x
topology: tpu7x:2x2x1
jax: 0.10.0
libtpu: 0.0.40
codegen_flags: <defaults>
</compile_context>

<pallas_src>
import math

import jax
import jax.numpy as jnp
from jax.experimental import pallas as pl
from jax.experimental.pallas import tpu as pltpu

_MIB = 1024 * 1024


def _round_up(a: int, b: int) -> int:
    return -(-a // b) * b


def _layer_scale_kernel(x_ref, g_ref, o_ref):
    # x_ref: (row_tile, col_tile) activation tile; g_ref: (1, col_tile) gamma
    # row kept resident across row steps.  Multiply, cast to the output dtype.
    o_ref[...] = (x_ref[...] * g_ref[...]).astype(o_ref.dtype)


def _tpu_generation_defaults():
    """Return (target_tile_bytes, vmem_cap_bytes, min_row_blocks) per TPU gen."""
    kind = ""
    try:
        kind = jax.devices()[0].device_kind.lower()
    except Exception:
        pass
    vmem_phys = None
    try:
        vmem_phys = pltpu.get_tpu_info().vmem_capacity_bytes
    except Exception:
        pass

    if "v7" in kind:
        target = 5 * _MIB          # 3.2 TB/s/TC -> bigger tiles to amortise step overhead
        cap = 32 * _MIB            # ~half of v7x's 64 MiB physical VMEM
        min_row_blocks = 4         # 2 TensorCores/chip: need >=2 parallel blocks
    elif "v6" in kind:
        target = 4 * _MIB          # 128 MiB VMEM easily holds 6x this
        cap = 48 * _MIB
        min_row_blocks = 1
    else:                          # v5e / unknown: 1-2 MiB is already >85% of roofline
        target = 2 * _MIB
        cap = 48 * _MIB
        min_row_blocks = 1

    if vmem_phys is not None:
        cap = min(cap, vmem_phys // 2)   # headroom for Mosaic scratch / fusions
    return target, cap, min_row_blocks


def layer_scale(x: jax.Array, gamma: jax.Array, *,
                target_tile_bytes: int | None = None) -> jax.Array:
    """x: (..., D), gamma: (D,). Returns x * gamma (broadcast over last axis)."""
    orig_shape = x.shape
    D = orig_shape[-1]
    assert gamma.shape == (D,), f"gamma must have shape ({D},), got {gamma.shape}"

    auto_target, vmem_cap, min_row_blocks = _tpu_generation_defaults()
    if target_tile_bytes is None:
        target_tile_bytes = auto_target
    # Never size tiles so the double-buffered in+out footprint exceeds the cap.
    target_tile_bytes = max(64 * 1024, min(target_tile_bytes, vmem_cap // 6))

    # PyTorch type promotion for `x * gamma` (bf16 * f32 -> f32, f32 * f32 -> f32).
    out_dtype = jnp.result_type(x.dtype, gamma.dtype)
    if out_dtype == x.dtype:
        # Native-width multiply (bf16 VPU on v6e/v7x); no per-element promotion.
        gamma = gamma.astype(x.dtype)

    x2 = x.reshape(-1, D)
    R = x2.shape[0]

    # --- lane-dense repacking -------------------------------------------------
    # If D is not a multiple of 128, fold k rows into one so the lane axis is
    # dense and every store is a full `vst`.  Pad the row count up to a
    # multiple of k (output sliced back) so the dense path always applies.
    k = 1
    pad_rows = 0
    if D % 128 != 0:
        k = 128 // math.gcd(D, 128)
        r_padded = _round_up(max(R, 1), k)
        pad_rows = r_padded - R
        if pad_rows:
            x2 = jnp.pad(x2, ((0, pad_rows), (0, 0)))
        x2 = x2.reshape(r_padded // k, D * k)
        g2 = jnp.tile(gamma, k).reshape(1, D * k)
    else:
        g2 = gamma.reshape(1, D)
    Rp, Dp = x2.shape  # Dp is always a multiple of 128 here

    itemsize_in = jnp.dtype(x.dtype).itemsize
    itemsize_out = jnp.dtype(out_dtype).itemsize
    sublane_pack = max(8, 32 // itemsize_in)

    # --- lane (column) tiling for very wide hidden dims ------------------------
    col_tile = Dp
    if Dp * itemsize_in * sublane_pack > target_tile_bytes:
        col_tile = (target_tile_bytes // (itemsize_in * sublane_pack)) // 128 * 128
        col_tile = max(128, min(col_tile, Dp))
    n_col_blocks = pl.cdiv(Dp, col_tile)

    # --- row tiling -------------------------------------------------------------
    # Big tiles amortise per-step overhead; align to the sublane packing of the
    # activation dtype (8 for f32, 16 for bf16, 32 for int8/fp8).
    row_tile = max(sublane_pack, target_tile_bytes // max(1, col_tile * itemsize_in))
    row_tile = max(sublane_pack, (row_tile // sublane_pack) * sublane_pack)
    # v7x: keep at least `min_row_blocks` blocks along a parallel axis so both
    # TensorCores get work (unless the lane axis already provides parallelism).
    if min_row_blocks > 1 and Rp > sublane_pack and n_col_blocks < min_row_blocks:
        cap_rows = _round_up(pl.cdiv(Rp, min_row_blocks), sublane_pack)
        if cap_rows < Rp:
            row_tile = min(row_tile, cap_rows)
    if row_tile >= Rp:
        row_tile = Rp  # single full-extent block for small inputs
    n_row_blocks = pl.cdiv(Rp, row_tile)

    grid = (n_row_blocks, n_col_blocks)

    # Pipelined VMEM footprint: double-buffered input tile + output tile + gamma.
    tile_bytes = row_tile * col_tile * (itemsize_in + itemsize_out)
    gamma_bytes = col_tile * jnp.dtype(gamma.dtype).itemsize
    vmem_limit = int(min(vmem_cap,
                         max(16 * _MIB, 2 * (tile_bytes + gamma_bytes) + 2 * _MIB)))

    out = pl.pallas_call(
        _layer_scale_kernel,
        out_shape=jax.ShapeDtypeStruct((Rp, Dp), out_dtype),
        grid_spec=pltpu.PrefetchScalarGridSpec(
            num_scalar_prefetch=0,
            grid=grid,
            in_specs=[
                pl.BlockSpec((row_tile, col_tile), lambda i, j: (i, j)),
                pl.BlockSpec((1, col_tile), lambda i, j: (0, j)),  # gamma resident per column block
            ],
            out_specs=pl.BlockSpec((row_tile, col_tile), lambda i, j: (i, j)),
        ),
        compiler_params=pltpu.CompilerParams(
            dimension_semantics=("parallel", "parallel"),
            vmem_limit_bytes=vmem_limit,
        ),
    )(x2, g2)

    if k > 1:
        out = out.reshape(Rp * k, D)
    if pad_rows:
        out = out[:R]
    return out.reshape(orig_shape)


if __name__ == "__main__":
    key = jax.random.PRNGKey(0)
    k0, k1, k2 = jax.random.split(key, 3)
    init_values = 1e-5

    # 1) ViT-style (batch, tokens, hidden) with D=32 and an ODD token count:
    #    exercises lane-dense repacking (fold 4 rows -> 128 lanes) plus the new
    #    row-padding path (R=18 padded to 20).
    B, N, D = 2, 9, 32
    x = jax.random.normal(k0, (B, N, D), dtype=jnp.float32)
    gamma = init_values * jnp.ones((D,), dtype=jnp.float32)
    y = jax.block_until_ready(layer_scale(x, gamma))
    assert y.shape == x.shape and y.dtype == x.dtype
    assert jnp.allclose(y, x * gamma, atol=1e-6, rtol=1e-6), "mismatch (D=32, padded rows)"

    # 2) D multiple of 128, row count (262) not a multiple of the tile: forces a
    #    multi-step grid with a masked partial last row block.
    B2, N2, D2 = 2, 131, 128
    x_b = jax.random.normal(k1, (B2, N2, D2), dtype=jnp.float32)
    gamma_b = init_values * jnp.ones((D2,), dtype=jnp.float32)
    y_b = jax.block_until_ready(layer_scale(x_b, gamma_b, target_tile_bytes=64 * 1024))
    assert jnp.allclose(y_b, x_b * gamma_b, atol=1e-6, rtol=1e-6), "mismatch (partial tile)"

    # 3) bf16 activations with bf16 gamma: native-width multiply path.
    B3, N3, D3 = 2, 8, 256
    x_c = jax.random.normal(k2, (B3, N3, D3), dtype=jnp.bfloat16)
    gamma_c = (init_values * jnp.ones((D3,), jnp.float32)).astype(jnp.bfloat16)
    y_c = jax.block_until_ready(layer_scale(x_c, gamma_c))
    assert y_c.dtype == jnp.bfloat16
    assert jnp.allclose(y_c.astype(jnp.float32),
                        x_c.astype(jnp.float32) * gamma_c.astype(jnp.float32),
                        atol=1e-2, rtol=1e-2), "mismatch (bf16 native path)"

    print("KERNEL_OK")
</pallas_src>

<mosaic_0001>
module attributes {stable_mosaic.version = 11 : i64} {
  func.func @_layer_scale_kernel(%arg0: i32, %arg1: i32, %arg2: memref<5x128xf32, #tpu.memory_space<vmem>>, %arg3: memref<1x128xf32, #tpu.memory_space<vmem>>, %arg4: memref<5x128xf32, #tpu.memory_space<vmem>>) attributes {dimension_semantics = [#tpu.dimension_semantics<parallel>, #tpu.dimension_semantics<parallel>], iteration_bounds = array<i64: 1, 1>, scalar_prefetch = 0 : i64, scratch_operands = 0 : i64, tpu.core_type = #tpu.core_type<tc>, window_params = [{transform_indices = @transform_0, window_bounds = array<i64: 5, 128>}, {transform_indices = @transform_1, window_bounds = array<i64: 1, 128>}, {transform_indices = @transform_2, window_bounds = array<i64: 5, 128>}]} {
    %c0 = arith.constant 0 : index
    %c0_0 = arith.constant 0 : index
    %0 = vector.load %arg2[%c0, %c0_0] : memref<5x128xf32, #tpu.memory_space<vmem>>, vector<5x128xf32>
    %c0_1 = arith.constant 0 : index
    %c0_2 = arith.constant 0 : index
    %1 = vector.load %arg3[%c0_1, %c0_2] : memref<1x128xf32, #tpu.memory_space<vmem>>, vector<1x128xf32>
    %2 = vector.broadcast %1 : vector<1x128xf32> to vector<5x128xf32>
    %3 = arith.mulf %0, %2 : vector<5x128xf32>
    %c0_3 = arith.constant 0 : index
    %c0_4 = arith.constant 0 : index
    %4 = vector.load %arg4[%c0_3, %c0_4] : memref<5x128xf32, #tpu.memory_space<vmem>>, vector<5x128xf32>
    tpu.vector_store %arg4[%c0_3, %c0_4], %3 {strides = array<i32>} : memref<5x128xf32, #tpu.memory_space<vmem>>, vector<5x128xf32>,
    return
  }
  func.func @transform_0(%arg0: i32, %arg1: i32) -> (i32, i32) {
    %c0_i32 = arith.constant 0 : i32
    return %arg0, %arg1 : i32, i32
  }
  func.func @transform_1(%arg0: i32, %arg1: i32) -> (i32, i32) {
    %c0_i32 = arith.constant 0 : i32
    %c0_i32_0 = arith.constant 0 : i32
    return %c0_i32, %arg1 : i32, i32
  }
  func.func @transform_2(%arg0: i32, %arg1: i32) -> (i32, i32) {
    %c0_i32 = arith.constant 0 : i32
    return %arg0, %arg1 : i32, i32
  }
}

</mosaic_0001>

<llo_original>
// kernel: tpu_custom_call.1
$region0: #{tpu_custom_call.1}
  #allocation0 [shape = 'u32[]', space=smem, size = 0x4, offset = 0x4, fixed_abs, tag = 'smem constant byte address 0x4 - core index']
  #allocation1 [shape = 'u32[144,128]{1,0:T(1,128)}', space=vmem, size = 0x12000, scoped, tag = 'internal scratch']
  %s0 = inlined_call_operand.hbm [shape: f32[5,128], index: 0, kind: input, shape index: {}]
  %s1 = inlined_call_operand.vmem [shape: f32[1,128], index: 1, kind: input, shape index: {}]
  %s2 = inlined_call_operand.hbm [shape: f32[5,128], index: 2, kind: output, shape index: {}]
  %s3 = sld [smem:[#allocation0]]
  $region22: #{tpu_custom_call.1} parent=0
    _
  %s5 = ssub.s32 1, %s3
  %s6 = scalar_select 0, %s5, %s3
  $region1: #{tpu_custom_call.1} parent=0
    #allocation2 [shape = 'u8[4096]{0}', space=vmem, size = 0x1000, scoped, tag = 'input window, operand 0, single buffered']
    #allocation3 [shape = 's32[1]{0}', space=sflag, size = 0x4, scoped, tag = 'scoped memory for tpu_custom_call.1']
    #allocation4 [shape = 's32[1]{0}', space=sflag, size = 0x4, scoped, tag = 'scoped memory for tpu_custom_call.1']
    #allocation5 [shape = 'u8[4096]{0}', space=vmem, size = 0x1000, scoped, tag = 'output window, operand 0, single buffered']
    %7 = vsyncpa [#allocation3], 0
    %8 = vsyncpa [#allocation4], 0
    // Predicated region
    $region2: #{tpu_custom_call.1} parent=1 // pred_check
      _
    $region3: #{tpu_custom_call.1} parent=1 // pred_check_branch
      %10 = sbr.rel (0) target = $region5
    $region4: #{tpu_custom_call.1} parent=1 // pred_region
      %s12 = ssub.s32 128, 128
      %13 = vsyncadd [#allocation3], %s12
      %s15 = sshll.u32 [#allocation2], 4
      %s16 = int_to_ptr.vmem [resolvable:$true] %s15
      %18 = dma.hbm_to_vmem [thread:$0]  %s0, 128, %s16, [#allocation3]
    $region5: #{tpu_custom_call.1} parent=1 // pred_fallthru
      _
    // Predicated region
    $region6: #{tpu_custom_call.1} parent=1 // pred_check
      _
    $region7: #{tpu_custom_call.1} parent=1 // pred_check_branch
      %20 = sbr.rel (0) target = $region9
    $region8: #{tpu_custom_call.1} parent=1 // pred_region
      _
    $region9: #{tpu_custom_call.1} parent=1 // pred_fallthru
      _
    // Predicated region
    $region10: #{tpu_custom_call.1} parent=1 // pred_check
      _
    $region11: #{tpu_custom_call.1} parent=1 // pred_check_branch
      %22 = sbr.rel (0) target = $region13
    $region12: #{tpu_custom_call.1} parent=1 // pred_region
      %23 = dma.done [#allocation3], 128
    $region13: #{tpu_custom_call.1} parent=1 // pred_fallthru
      _
    %v24 = vld [vmem:[#allocation2] sm:$0x1f]
    %v25 = vld [vmem:[%s1] sm:$0x1]
    %v27 = vlaneseq
    %v28 = vshrl.u32 %v27, 7
    %v29 = vsub.s32 0, %v28
    %v30 = vrot.slane %v25, %v29
    %v32 = vmul.f32 %v24, %v30
    %33 = vst [vmem:[#allocation5] sm:$0x1f] %v32
    // Predicated region
    $region14: #{tpu_custom_call.1} parent=1 // pred_check
      _
    $region15: #{tpu_custom_call.1} parent=1 // pred_check_branch
      %35 = sbr.rel (0) target = $region17
    $region16: #{tpu_custom_call.1} parent=1 // pred_region
      %s37 = ssub.s32 128, 128
      %38 = vsyncadd [#allocation4], %s37
      %s40 = sshll.u32 [#allocation5], 4
      %s41 = int_to_ptr.vmem [resolvable:$true] %s40
      %43 = dma.vmem_to_hbm [thread:$0]  %s41, 128, %s2, [#allocation4]
    $region17: #{tpu_custom_call.1} parent=1 // pred_fallthru
      _
    // Predicated region
    $region18: #{tpu_custom_call.1} parent=1 // pred_check
      _
    $region19: #{tpu_custom_call.1} parent=1 // pred_check_branch
      %45 = sbr.rel (0) target = $region21
    $region20: #{tpu_custom_call.1} parent=1 // pred_region
      %46 = dma.done [#allocation4], 128
    $region21: #{tpu_custom_call.1} parent=1 // pred_fallthru
      _
    %47 = vsyncpa [#allocation3], 1
    %48 = vsyncpa [#allocation4], 1

</llo_original>
